<compile_context>
chip_gen: v6e
topology: v6e:2x2x1
jax: 0.10.0
libtpu: 0.0.40
codegen_flags: <defaults>
</compile_context>

<pallas_src>
import jax
import jax.numpy as jnp
from jax.experimental import pallas as pl
from jax.experimental.pallas import tpu as pltpu


# --------------------------------------------------------------------------- #
# Kernels
# --------------------------------------------------------------------------- #
def _make_attention_kernel(c: int):
    """Pass 1: per-batch attention maps -> exchange factor."""

    def kernel(wb_ref, x1_ref, x2_ref, ex_ref):
        # wb_ref : SMEM (c + 3,) = [w_0 .. w_{c-1}, bias, scale, threshold]
        # x*_ref : VMEM (bb, c, HW) input blocks (full C and HW per block)
        # ex_ref : VMEM (bb, 1, 128) output block (exchange factor, lane-bcast)
        bias = wb_ref[c]
        scale = wb_ref[c + 1]
        threshold = wb_ref[c + 2]

        x1 = x1_ref[...].astype(jnp.float32)          # (bb, c, HW)
        x2 = x2_ref[...].astype(jnp.float32)
        bb = x1.shape[0]

        # 1x1 conv (C -> 1): per-channel FMA with SMEM scalar weights; the
        # accumulators stay dense 2-D (bb, HW) slabs (no (bb, 8, HW) temp).
        a1 = x1[:, 0, :] * wb_ref[0]
        a2 = x2[:, 0, :] * wb_ref[0]
        for ch in range(1, c):
            w_ch = wb_ref[ch]
            a1 = a1 + x1[:, ch, :] * w_ch
            a2 = a2 + x2[:, ch, :] * w_ch

        # Fused softmax over the spatial axis for both maps, packed as a 2-D
        # (2*bb, HW) slab so sublanes are used densely.  Exact reciprocal.
        z = scale * (jnp.concatenate([a1, a2], axis=0) + bias)   # (2*bb, HW)
        m = jnp.max(z, axis=-1, keepdims=True)
        e = jnp.exp(z - m)
        s = e / jnp.sum(e, axis=-1, keepdims=True)

        # Per-example L2 distance between the two attention maps.
        diff = s[:bb] - s[bb:]
        dist = jnp.sqrt(jnp.sum(diff * diff, axis=-1, keepdims=True))  # (bb, 1)

        # torch.median over a size-1 dim is the identity -> argument is 0 and
        # ex == 0.5; kept faithful to the PyTorch module.
        median = dist
        ex = jax.nn.sigmoid(threshold * (dist - median))               # (bb, 1)

        ex_ref[...] = jnp.broadcast_to(ex.reshape(bb, 1, 1), ex_ref.shape)

    return kernel


def _blend_kernel(ex_ref, x1_ref, x2_ref, o1_ref, o2_ref):
    """Pass 2: element-wise blend; ex_ref is (R, 1), x*/o* are (R, L)."""
    x1 = x1_ref[...].astype(jnp.float32)
    x2 = x2_ref[...].astype(jnp.float32)
    delta = ex_ref[...] * (x2 - x1)                 # (R, 1) broadcast over lanes
    # NOTE: with the module's degenerate median, o1 == o2 == 0.5*(x1+x2); both
    # outputs are still emitted to preserve the module's interface.
    o1_ref[...] = (x1 + delta).astype(o1_ref.dtype)
    o2_ref[...] = (x2 - delta).astype(o2_ref.dtype)


# --------------------------------------------------------------------------- #
# Block-size / VMEM helpers (trace-time Python)
# --------------------------------------------------------------------------- #
def _cdiv(a, b):
    return -(-a // b)


def _vmem_budget_bytes():
    try:
        phys = int(getattr(pltpu.get_tpu_info(), "vmem_capacity_bytes"))
        if phys <= 0:
            raise ValueError("bad vmem size")
    except Exception:
        phys = 64 << 20          # conservative default: v7x per-TensorCore VMEM
    # Leave headroom for Mosaic scratch: ~48 MiB on v7x, ~96 MiB on v5e/v6e.
    budget = min(phys * 3 // 4, phys - (16 << 20))
    return max(budget, 24 << 20)


def _largest_lane_divisor(hw, cap_elems):
    # hw is a multiple of 128; largest multiple-of-128 divisor of hw <= cap.
    best, d = 128, 128
    while d <= min(hw, cap_elems):
        if hw % d == 0:
            best = d
        d += 128
    return best


def _largest_divisor_leq(n, cap):
    best = 1
    for d in range(1, min(n, cap) + 1):
        if n % d == 0:
            best = d
    return best


# --------------------------------------------------------------------------- #
# Forward pass
# --------------------------------------------------------------------------- #
def learnable_spatial_exchange2(x1, x2, weight, bias, scale, threshold):
    """x1, x2: (B, C, H, W).  weight: (1, C, 1, 1).  bias: (1,).
    scale, threshold: scalars.  Returns (out_x1, out_x2) in NCHW."""
    B, C, H, W = x1.shape
    HW = H * W
    dtype = x1.dtype

    vmem_budget = _vmem_budget_bytes()
    # Per-stream block target: ~4 MiB on v7x (64 MiB VMEM), ~8 MiB on v5e/v6e.
    block_target = max(1 << 20, vmem_budget // 12)

    # ---------------- Pass 1: attention / distance -> per-batch exchange ----
    x1v = x1.reshape(B, C, HW)
    x2v = x2.reshape(B, C, HW)
    wb = jnp.concatenate([
        jnp.asarray(weight, jnp.float32).reshape(C),
        jnp.asarray(bias, jnp.float32).reshape(1),
        jnp.asarray(scale, jnp.float32).reshape(1),
        jnp.asarray(threshold, jnp.float32).reshape(1),
    ])

    # Batch block sized from the (sublane/lane padded) VMEM footprint; choose a
    # divisor of B so every block is exactly in bounds (no ragged batch edge).
    c_pad = _cdiv(C, 8) * 8
    hw_pad = _cdiv(HW, 128) * 128
    per_b_bytes = c_pad * hw_pad * 4
    bb1_cap = max(1, min(B, vmem_budget // (6 * per_b_bytes), 256))
    bb1 = _largest_divisor_leq(B, bb1_cap)
    n1 = B // bb1
    # TODO(synk): for feature maps so large that one batch element's C*H*W no
    # longer fits VMEM, this pass should chunk the spatial axis with an online
    # softmax; the blend pass below already scales to any shape.

    ex_blocks = pl.pallas_call(
        _make_attention_kernel(C),
        out_shape=jax.ShapeDtypeStruct((B, 1, 128), jnp.float32),
        grid=(n1,),
        in_specs=[
            pl.BlockSpec(memory_space=pltpu.MemorySpace.SMEM),   # weights + scalars
            pl.BlockSpec((bb1, C, HW), lambda i: (i, 0, 0)),      # x1
            pl.BlockSpec((bb1, C, HW), lambda i: (i, 0, 0)),      # x2
        ],
        out_specs=pl.BlockSpec((bb1, 1, 128), lambda i: (i, 0, 0)),
        compiler_params=pltpu.CompilerParams(
            dimension_semantics=("parallel",),
            vmem_limit_bytes=int(vmem_budget),
        ),
    )(wb, x1v, x2v)
    ex = ex_blocks[:, 0, 0]                                       # (B,)

    # ---------------- Pass 2: element-wise blend on a dense 2-D view --------
    rows = B * C
    x1r = x1.reshape(rows, HW)            # free, contiguous reshape (no copy)
    x2r = x2.reshape(rows, HW)
    ex_rows = jnp.repeat(ex, C).reshape(rows, 1)   # per-row exchange factor

    # Lane (spatial) block: multiple of 128 dividing HW, else the full HW
    # (legal via the full-dim exception; avoids any padding of the big tensors).
    if HW % 128 == 0:
        L = _largest_lane_divisor(HW, max(128, block_target // (8 * 4)))
    else:
        L = HW
    # Row block: multiple of 8 (or all rows), sized to the per-stream target.
    r_cap = max(8, (block_target // (L * 4)) // 8 * 8)
    if rows <= r_cap:
        R = rows
    else:
        R = min(r_cap, (rows // 8) * 8)

    # Guarantee >=2 "parallel" grid steps when the shape allows (v7x dual TC).
    if _cdiv(rows, R) * (HW // L) == 1:
        if HW % 128 == 0 and L >= 256:
            L = _largest_lane_divisor(HW, L // 2)
        elif rows >= 16:
            R = max(8, _cdiv(_cdiv(rows, 2), 8) * 8)

    n_r = _cdiv(rows, R)
    n_l = HW // L

    out1, out2 = pl.pallas_call(
        _blend_kernel,
        out_shape=(jax.ShapeDtypeStruct((rows, HW), dtype),
                   jax.ShapeDtypeStruct((rows, HW), dtype)),
        grid=(n_r, n_l),
        in_specs=[
            pl.BlockSpec((R, 1), lambda i, j: (i, 0)),    # per-row ex (tiny)
            pl.BlockSpec((R, L), lambda i, j: (i, j)),    # x1
            pl.BlockSpec((R, L), lambda i, j: (i, j)),    # x2
        ],
        out_specs=(
            pl.BlockSpec((R, L), lambda i, j: (i, j)),
            pl.BlockSpec((R, L), lambda i, j: (i, j)),
        ),
        compiler_params=pltpu.CompilerParams(
            dimension_semantics=("parallel", "parallel"),
            vmem_limit_bytes=int(vmem_budget),
        ),
    )(ex_rows, x1r, x2r)

    return out1.reshape(B, C, H, W), out2.reshape(B, C, H, W)


# --------------------------------------------------------------------------- #
# Reference + self-test
# --------------------------------------------------------------------------- #
def _reference(x1, x2, weight, bias, scale, threshold):
    """Pure-JAX reference matching the PyTorch module exactly."""
    def att(x):
        a = jnp.einsum('bchw,c->bhw', x, weight.reshape(-1)) + bias.reshape(())
        flat = a.reshape(x.shape[0], -1)
        return jax.nn.softmax(scale * flat, axis=1)

    a1 = att(x1)
    a2 = att(x2)
    dist = jnp.sqrt(jnp.sum((a1 - a2) ** 2, axis=1, keepdims=True))   # (B, 1)
    median = dist                                   # median over singleton dim
    ex = jax.nn.sigmoid(threshold * (dist - median)).reshape(-1, 1, 1, 1)
    out1 = ex * x2 + (1 - ex) * x1
    out2 = ex * x1 + (1 - ex) * x2
    return out1, out2


def _run_case(key, B, C, H, W):
    k1, k2, kw, kb = jax.random.split(key, 4)
    x1 = jax.random.normal(k1, (B, C, H, W), dtype=jnp.float32)
    x2 = jax.random.normal(k2, (B, C, H, W), dtype=jnp.float32)
    weight = jax.random.normal(kw, (1, C, 1, 1), dtype=jnp.float32) * 0.1
    bias = jax.random.normal(kb, (1,), dtype=jnp.float32) * 0.1
    scale = jnp.float32(10.0)      # init_scale
    threshold = jnp.float32(0.5)   # init_threshold

    out1, out2 = learnable_spatial_exchange2(x1, x2, weight, bias, scale, threshold)
    jax.block_until_ready((out1, out2))

    ref1, ref2 = _reference(x1, x2, weight, bias, scale, threshold)
    assert out1.shape == ref1.shape and out2.shape == ref2.shape
    assert jnp.allclose(out1, ref1, atol=1e-5, rtol=1e-5)
    assert jnp.allclose(out2, ref2, atol=1e-5, rtol=1e-5)


if __name__ == "__main__":
    key = jax.random.PRNGKey(0)
    ka, kb = jax.random.split(key)

    # Lane-aligned case: exercises the 2-D lane-chunked "parallel" blend grid.
    _run_case(ka, B=2, C=4, H=16, W=16)

    # Unaligned case: full-dim (12, 49) blocks, no padding anywhere.
    _run_case(kb, B=3, C=4, H=7, W=7)

    print("KERNEL_OK")
</pallas_src>

<mosaic_0001>
module attributes {stable_mosaic.version = 11 : i64} {
  func.func @kernel(%arg0: i32, %arg1: memref<7xf32, #tpu.memory_space<smem>>, %arg2: memref<2x4x256xf32, #tpu.memory_space<vmem>>, %arg3: memref<2x4x256xf32, #tpu.memory_space<vmem>>, %arg4: memref<2x1x128xf32, #tpu.memory_space<vmem>>) attributes {dimension_semantics = [#tpu.dimension_semantics<parallel>], iteration_bounds = array<i64: 1>, scalar_prefetch = 0 : i64, scratch_operands = 0 : i64, tpu.core_type = #tpu.core_type<tc>, window_params = [{transform_indices = @transform_0, window_bounds = array<i64: 7>}, {transform_indices = @transform_1, window_bounds = array<i64: 2, 4, 256>}, {transform_indices = @transform_2, window_bounds = array<i64: 2, 4, 256>}, {transform_indices = @transform_3, window_bounds = array<i64: 2, 1, 128>}]} {
    %c4 = arith.constant 4 : index
    %0 = memref.load %arg1[%c4] : memref<7xf32, #tpu.memory_space<smem>>
    %c5 = arith.constant 5 : index
    %1 = memref.load %arg1[%c5] : memref<7xf32, #tpu.memory_space<smem>>
    %c6 = arith.constant 6 : index
    %2 = memref.load %arg1[%c6] : memref<7xf32, #tpu.memory_space<smem>>
    %c0 = arith.constant 0 : index
    %c0_0 = arith.constant 0 : index
    %c0_1 = arith.constant 0 : index
    %3 = vector.load %arg2[%c0, %c0_0, %c0_1] : memref<2x4x256xf32, #tpu.memory_space<vmem>>, vector<2x4x256xf32>
    %c0_2 = arith.constant 0 : index
    %c0_3 = arith.constant 0 : index
    %c0_4 = arith.constant 0 : index
    %4 = vector.load %arg3[%c0_2, %c0_3, %c0_4] : memref<2x4x256xf32, #tpu.memory_space<vmem>>, vector<2x4x256xf32>
    %5 = vector.extract_strided_slice %3 {offsets = [0, 0, 0], sizes = [2, 1, 256], strides = [1, 1, 1]} : vector<2x4x256xf32> to vector<2x1x256xf32>
    %6 = vector.shape_cast %5 : vector<2x1x256xf32> to vector<2x256xf32>
    %c0_5 = arith.constant 0 : index
    %7 = memref.load %arg1[%c0_5] : memref<7xf32, #tpu.memory_space<smem>>
    %8 = vector.broadcast %7 : f32 to vector<2x256xf32>
    %9 = arith.mulf %6, %8 : vector<2x256xf32>
    %10 = vector.extract_strided_slice %4 {offsets = [0, 0, 0], sizes = [2, 1, 256], strides = [1, 1, 1]} : vector<2x4x256xf32> to vector<2x1x256xf32>
    %11 = vector.shape_cast %10 : vector<2x1x256xf32> to vector<2x256xf32>
    %c0_6 = arith.constant 0 : index
    %12 = memref.load %arg1[%c0_6] : memref<7xf32, #tpu.memory_space<smem>>
    %13 = vector.broadcast %12 : f32 to vector<2x256xf32>
    %14 = arith.mulf %11, %13 : vector<2x256xf32>
    %c1 = arith.constant 1 : index
    %15 = memref.load %arg1[%c1] : memref<7xf32, #tpu.memory_space<smem>>
    %16 = vector.extract_strided_slice %3 {offsets = [0, 1, 0], sizes = [2, 1, 256], strides = [1, 1, 1]} : vector<2x4x256xf32> to vector<2x1x256xf32>
    %17 = vector.shape_cast %16 : vector<2x1x256xf32> to vector<2x256xf32>
    %18 = vector.broadcast %15 : f32 to vector<2x256xf32>
    %19 = arith.mulf %17, %18 : vector<2x256xf32>
    %20 = arith.addf %9, %19 : vector<2x256xf32>
    %21 = vector.extract_strided_slice %4 {offsets = [0, 1, 0], sizes = [2, 1, 256], strides = [1, 1, 1]} : vector<2x4x256xf32> to vector<2x1x256xf32>
    %22 = vector.shape_cast %21 : vector<2x1x256xf32> to vector<2x256xf32>
    %23 = vector.broadcast %15 : f32 to vector<2x256xf32>
    %24 = arith.mulf %22, %23 : vector<2x256xf32>
    %25 = arith.addf %14, %24 : vector<2x256xf32>
    %c2 = arith.constant 2 : index
    %26 = memref.load %arg1[%c2] : memref<7xf32, #tpu.memory_space<smem>>
    %27 = vector.extract_strided_slice %3 {offsets = [0, 2, 0], sizes = [2, 1, 256], strides = [1, 1, 1]} : vector<2x4x256xf32> to vector<2x1x256xf32>
    %28 = vector.shape_cast %27 : vector<2x1x256xf32> to vector<2x256xf32>
    %29 = vector.broadcast %26 : f32 to vector<2x256xf32>
    %30 = arith.mulf %28, %29 : vector<2x256xf32>
    %31 = arith.addf %20, %30 : vector<2x256xf32>
    %32 = vector.extract_strided_slice %4 {offsets = [0, 2, 0], sizes = [2, 1, 256], strides = [1, 1, 1]} : vector<2x4x256xf32> to vector<2x1x256xf32>
    %33 = vector.shape_cast %32 : vector<2x1x256xf32> to vector<2x256xf32>
    %34 = vector.broadcast %26 : f32 to vector<2x256xf32>
    %35 = arith.mulf %33, %34 : vector<2x256xf32>
    %36 = arith.addf %25, %35 : vector<2x256xf32>
    %c3 = arith.constant 3 : index
    %37 = memref.load %arg1[%c3] : memref<7xf32, #tpu.memory_space<smem>>
    %38 = vector.extract_strided_slice %3 {offsets = [0, 3, 0], sizes = [2, 1, 256], strides = [1, 1, 1]} : vector<2x4x256xf32> to vector<2x1x256xf32>
    %39 = vector.shape_cast %38 : vector<2x1x256xf32> to vector<2x256xf32>
    %40 = vector.broadcast %37 : f32 to vector<2x256xf32>
    %41 = arith.mulf %39, %40 : vector<2x256xf32>
    %42 = arith.addf %31, %41 : vector<2x256xf32>
    %43 = vector.extract_strided_slice %4 {offsets = [0, 3, 0], sizes = [2, 1, 256], strides = [1, 1, 1]} : vector<2x4x256xf32> to vector<2x1x256xf32>
    %44 = vector.shape_cast %43 : vector<2x1x256xf32> to vector<2x256xf32>
    %45 = vector.broadcast %37 : f32 to vector<2x256xf32>
    %46 = arith.mulf %44, %45 : vector<2x256xf32>
    %47 = arith.addf %36, %46 : vector<2x256xf32>
    %48 = tpu.concatenate %42, %47 in 0 : vector<2x256xf32>, vector<2x256xf32> -> vector<4x256xf32>
    %49 = vector.broadcast %0 : f32 to vector<4x256xf32>
    %50 = arith.addf %48, %49 : vector<4x256xf32>
    %51 = vector.broadcast %1 : f32 to vector<4x256xf32>
    %52 = arith.mulf %51, %50 : vector<4x256xf32>
    %cst = arith.constant dense<0xFF800000> : vector<4xf32>
    %53 = vector.multi_reduction <maximumf>, %52, %cst [1] : vector<4x256xf32> to vector<4xf32>
    %54 = vector.shape_cast %53 : vector<4xf32> to vector<4x1xf32>
    %55 = vector.broadcast %54 : vector<4x1xf32> to vector<4x256xf32>
    %56 = arith.subf %52, %55 : vector<4x256xf32>
    %57 = math.exp %56 : vector<4x256xf32>
    %cst_7 = arith.constant dense<0.000000e+00> : vector<4xf32>
    %58 = vector.multi_reduction <add>, %57, %cst_7 [1] : vector<4x256xf32> to vector<4xf32>
    %59 = vector.shape_cast %58 : vector<4xf32> to vector<4x1xf32>
    %60 = vector.broadcast %59 : vector<4x1xf32> to vector<4x256xf32>
    %61 = arith.divf %57, %60 : vector<4x256xf32>
    %62 = vector.extract_strided_slice %61 {offsets = [0, 0], sizes = [2, 256], strides = [1, 1]} : vector<4x256xf32> to vector<2x256xf32>
    %63 = vector.extract_strided_slice %61 {offsets = [2, 0], sizes = [2, 256], strides = [1, 1]} : vector<4x256xf32> to vector<2x256xf32>
    %64 = arith.subf %62, %63 : vector<2x256xf32>
    %65 = arith.mulf %64, %64 : vector<2x256xf32>
    %cst_8 = arith.constant dense<0.000000e+00> : vector<2xf32>
    %66 = vector.multi_reduction <add>, %65, %cst_8 [1] : vector<2x256xf32> to vector<2xf32>
    %67 = vector.shape_cast %66 : vector<2xf32> to vector<2x1xf32>
    %68 = math.sqrt %67 : vector<2x1xf32>
    %69 = arith.subf %68, %68 : vector<2x1xf32>
    %70 = vector.broadcast %2 : f32 to vector<2x1xf32>
    %71 = arith.mulf %70, %69 : vector<2x1xf32>
    %72 = arith.negf %71 : vector<2x1xf32>
    %73 = math.exp %72 : vector<2x1xf32>
    %cst_9 = arith.constant 1.000000e+00 : f32
    %74 = vector.broadcast %cst_9 : f32 to vector<2x1xf32>
    %75 = arith.addf %74, %73 : vector<2x1xf32>
    %76 = arith.divf %74, %75 : vector<2x1xf32>
    %77 = vector.shape_cast %76 : vector<2x1xf32> to vector<2x1x1xf32>
    %78 = vector.shape_cast %77 : vector<2x1x1xf32> to vector<2x1x1xf32>
    %79 = vector.broadcast %78 : vector<2x1x1xf32> to vector<2x1x128xf32>
    %c0_10 = arith.constant 0 : index
    %c0_11 = arith.constant 0 : index
    %c0_12 = arith.constant 0 : index
    %80 = vector.load %arg4[%c0_10, %c0_11, %c0_12] : memref<2x1x128xf32, #tpu.memory_space<vmem>>, vector<2x1x128xf32>
    tpu.vector_store %arg4[%c0_10, %c0_11, %c0_12], %79 {strides = array<i32>} : memref<2x1x128xf32, #tpu.memory_space<vmem>>, vector<2x1x128xf32>,
    return
  }
  func.func @transform_0(%arg0: i32) -> i32 {
    %c0_i32 = arith.constant 0 : i32
    %c0_i32_0 = arith.constant 0 : i32
    return %c0_i32 : i32
  }
  func.func @transform_1(%arg0: i32) -> (i32, i32, i32) {
    %c0_i32 = arith.constant 0 : i32
    %c0_i32_0 = arith.constant 0 : i32
    %c0_i32_1 = arith.constant 0 : i32
    return %arg0, %c0_i32, %c0_i32_0 : i32, i32, i32
  }
  func.func @transform_2(%arg0: i32) -> (i32, i32, i32) {
    %c0_i32 = arith.constant 0 : i32
    %c0_i32_0 = arith.constant 0 : i32
    %c0_i32_1 = arith.constant 0 : i32
    return %arg0, %c0_i32, %c0_i32_0 : i32, i32, i32
  }
  func.func @transform_3(%arg0: i32) -> (i32, i32, i32) {
    %c0_i32 = arith.constant 0 : i32
    %c0_i32_0 = arith.constant 0 : i32
    %c0_i32_1 = arith.constant 0 : i32
    return %arg0, %c0_i32, %c0_i32_0 : i32, i32, i32
  }
}

</mosaic_0001>

<llo_original>
// kernel: tpu_custom_call.1
$region0: #{tpu_custom_call.1}
  #allocation0 [shape = 'u32[]', space=smem, size = 0x4, offset = 0x4, fixed_abs, tag = 'smem constant byte address 0x4 - core index']
  #allocation1 [shape = 'u32[144,128]{1,0:T(1,128)}', space=vmem, size = 0x12000, scoped, tag = 'internal scratch']
  %s0 = inlined_call_operand.hbm [shape: f32[7], index: 0, kind: input, shape index: {}]
  %s1 = inlined_call_operand.hbm [shape: f32[2,4,256], index: 1, kind: input, shape index: {}]
  %s2 = inlined_call_operand.hbm [shape: f32[2,4,256], index: 2, kind: input, shape index: {}]
  %s3 = inlined_call_operand.hbm [shape: f32[2,1,128], index: 3, kind: output, shape index: {}]
  %s4 = sld [smem:[#allocation0]]
  $region34: #{tpu_custom_call.1} parent=0
    _
  %s6 = ssub.s32 1, %s4
  %s7 = scalar_select 0, %s6, %s4
  $region1: #{tpu_custom_call.1} parent=0
    #allocation2 [shape = 'u8[512]{0}', space=smem, size = 0x200, scoped, tag = 'input window, operand 0, single buffered']
    #allocation3 [shape = 's32[1]{0}', space=sflag, size = 0x4, scoped, tag = 'scoped memory for tpu_custom_call.1']
    #allocation4 [shape = 's32[1]{0}', space=sflag, size = 0x4, scoped, tag = 'scoped memory for tpu_custom_call.1']
    #allocation5 [shape = 's32[1]{0}', space=sflag, size = 0x4, scoped, tag = 'scoped memory for tpu_custom_call.1']
    #allocation6 [shape = 'u8[8192]{0}', space=vmem, size = 0x2000, scoped, tag = 'input window, operand 1, single buffered']
    #allocation7 [shape = 'u8[8192]{0}', space=vmem, size = 0x2000, scoped, tag = 'input window, operand 2, single buffered']
    #allocation8 [shape = 's32[1]{0}', space=sflag, size = 0x4, scoped, tag = 'scoped memory for tpu_custom_call.1']
    #allocation9 [shape = 'u8[1024]{0}', space=vmem, size = 0x400, scoped, tag = 'output window, operand 0, single buffered']
    %8 = vsyncpa [#allocation5], 0
    %9 = vsyncpa [#allocation3], 0
    %10 = vsyncpa [#allocation8], 0
    %11 = vsyncpa [#allocation4], 0
    // Predicated region
    $region2: #{tpu_custom_call.1} parent=1 // pred_check
      _
    $region3: #{tpu_custom_call.1} parent=1 // pred_check_branch
      %13 = sbr.rel (0) target = $region5
    $region4: #{tpu_custom_call.1} parent=1 // pred_region
      %s15 = ssub.s32 16, 16
      %16 = vsyncadd [#allocation5], %s15
      %19 = dma.hbm_to_smem %s0, 16, [#allocation2], [#allocation5]
    $region5: #{tpu_custom_call.1} parent=1 // pred_fallthru
      _
    // Predicated region
    $region6: #{tpu_custom_call.1} parent=1 // pred_check
      _
    $region7: #{tpu_custom_call.1} parent=1 // pred_check_branch
      %21 = sbr.rel (0) target = $region9
    $region8: #{tpu_custom_call.1} parent=1 // pred_region
      %s23 = ssub.s32 256, 256
      %24 = vsyncadd [#allocation3], %s23
      %s25 = sshll.u32 [#allocation6], 4
      %s26 = int_to_ptr.vmem [resolvable:$true] %s25
      %31 = dma.hbm_to_vmem [thread:$0]  %s1, 256, %s26, [#allocation3], 128, 128, 8
    $region9: #{tpu_custom_call.1} parent=1 // pred_fallthru
      _
    // Predicated region
    $region10: #{tpu_custom_call.1} parent=1 // pred_check
      _
    $region11: #{tpu_custom_call.1} parent=1 // pred_check_branch
      %33 = sbr.rel (0) target = $region13
    $region12: #{tpu_custom_call.1} parent=1 // pred_region
      %s35 = ssub.s32 256, 256
      %36 = vsyncadd [#allocation8], %s35
      %s37 = sshll.u32 [#allocation7], 4
      %s38 = int_to_ptr.vmem [resolvable:$true] %s37
      %43 = dma.hbm_to_vmem [thread:$0]  %s2, 256, %s38, [#allocation8], 128, 128, 8
    $region13: #{tpu_custom_call.1} parent=1 // pred_fallthru
      _
    // Predicated region
    $region14: #{tpu_custom_call.1} parent=1 // pred_check
      _
    $region15: #{tpu_custom_call.1} parent=1 // pred_check_branch
      %45 = sbr.rel (0) target = $region17
    $region16: #{tpu_custom_call.1} parent=1 // pred_region
      %46 = dma.done [#allocation5], 16
    $region17: #{tpu_custom_call.1} parent=1 // pred_fallthru
      _
    // Predicated region
    $region18: #{tpu_custom_call.1} parent=1 // pred_check
      _
    $region19: #{tpu_custom_call.1} parent=1 // pred_check_branch
      %48 = sbr.rel (0) target = $region21
    $region20: #{tpu_custom_call.1} parent=1 // pred_region
      %49 = dma.done [#allocation3], 256
    $region21: #{tpu_custom_call.1} parent=1 // pred_fallthru
      _
    // Predicated region
    $region22: #{tpu_custom_call.1} parent=1 // pred_check
      _
    $region23: #{tpu_custom_call.1} parent=1 // pred_check_branch
      %51 = sbr.rel (0) target = $region25
    $region24: #{tpu_custom_call.1} parent=1 // pred_region
      %52 = dma.done [#allocation8], 256
    $region25: #{tpu_custom_call.1} parent=1 // pred_fallthru
      _
    %53 = sfence
    %s54 = sld [smem:[#allocation2 + $0x4]]
    %s55 = sld [smem:[#allocation2 + $0x5]]
    %s56 = sld [smem:[#allocation2 + $0x6]]
    %v57 = vld [vmem:[#allocation6] sm:$0xff]
    %v58 = vld [vmem:[#allocation6 + $0x8] sm:$0xff]
    %v59 = vld [vmem:[#allocation7] sm:$0xff]
    %v60 = vld [vmem:[#allocation7 + $0x8] sm:$0xff]
    %s61 = sld [smem:[#allocation2]]
    %v62 = vstv %s61
    %v63 = vmul.f32 %v57, %v62
    %v64 = vmul.f32 %v58, %v62
    %v65 = vmul.f32 %v59, %v62
    %v66 = vmul.f32 %v60, %v62
    %s67 = sld [smem:[#allocation2 + $0x1]]
    %v68 = vstv %s67
    %v69 = vmul.f32 %v57, %v68
    %v70 = vmul.f32 %v58, %v68
    %v73 = vrot.slane %v69, 5
    %v74 = vrot.slane %v73, 4
    %v75 = vrot.slane %v70, 5
    %v76 = vrot.slane %v75, 4
    %v79 = vadd.f32 %v63, %v74
    %v80 = vadd.f32 %v64, %v76
    %v81 = vmul.f32 %v59, %v68
    %v82 = vmul.f32 %v60, %v68
    %v85 = vrot.slane %v81, 5
    %v86 = vrot.slane %v85, 4
    %v87 = vrot.slane %v82, 5
    %v88 = vrot.slane %v87, 4
    %v91 = vadd.f32 %v65, %v86
    %v92 = vadd.f32 %v66, %v88
    %s93 = sld [smem:[#allocation2 + $0x2]]
    %v94 = vstv %s93
    %v95 = vmul.f32 %v57, %v94
    %v96 = vmul.f32 %v58, %v94
    %v99 = vrot.slane %v95, 6
    %v100 = vrot.slane %v99, 4
    %v101 = vrot.slane %v96, 6
    %v102 = vrot.slane %v101, 4
    %v105 = vadd.f32 %v79, %v100
    %v106 = vadd.f32 %v80, %v102
    %v107 = vmul.f32 %v59, %v94
    %v108 = vmul.f32 %v60, %v94
    %v111 = vrot.slane %v107, 6
    %v112 = vrot.slane %v111, 4
    %v113 = vrot.slane %v108, 6
    %v114 = vrot.slane %v113, 4
    %v117 = vadd.f32 %v91, %v112
    %v118 = vadd.f32 %v92, %v114
    %s119 = sld [smem:[#allocation2 + $0x3]]
    %v120 = vstv %s119
    %v121 = vmul.f32 %v57, %v120
    %v122 = vmul.f32 %v58, %v120
    %v125 = vrot.slane %v121, 7
    %v126 = vrot.slane %v125, 4
    %v127 = vrot.slane %v122, 7
    %v128 = vrot.slane %v127, 4
    %v131 = vadd.f32 %v105, %v126
    %v132 = vadd.f32 %v106, %v128
    %v133 = vmul.f32 %v59, %v120
    %v134 = vmul.f32 %v60, %v120
    %v137 = vrot.slane %v133, 7
    %v138 = vrot.slane %v137, 4
    %v139 = vrot.slane %v134, 7
    %v140 = vrot.slane %v139, 4
    %v143 = vadd.f32 %v117, %v138
    %v144 = vadd.f32 %v118, %v140
    %v147 = vlaneseq
    %v148 = vshrl.u32 %v147, 7
    %v149 = vsub.s32 0, %v148
    %v150 = vrot.slane %v131, %v149
    %v151 = vlaneseq
    %v152 = vshrl.u32 %v151, 7
    %v153 = vsub.s32 4, %v152
    %v154 = vrot.slane %v131, %v153
    %v155 = vlaneseq
    %v156 = vshrl.u32 %v155, 7
    %v157 = vsub.s32 0, %v156
    %v158 = vrot.slane %v132, %v157
    %v159 = vlaneseq
    %v160 = vshrl.u32 %v159, 7
    %v161 = vsub.s32 4, %v160
    %v162 = vrot.slane %v132, %v161
    %vm163 = vcmask 1041409
    %v164 = vsel %vm163, %v158, %v150
    %v165 = vsel %vm163, %v162, %v154
    %v170 = vlaneseq
    %v171 = vshrl.u32 %v170, 7
    %v172 = vsub.s32 0, %v171
    %v173 = vrot.slane %v143, %v172
    %v174 = vlaneseq
    %v175 = vshrl.u32 %v174, 7
    %v176 = vsub.s32 4, %v175
    %v177 = vrot.slane %v143, %v176
    %v178 = vlaneseq
    %v179 = vshrl.u32 %v178, 7
    %v180 = vsub.s32 0, %v179
    %v181 = vrot.slane %v144, %v180
    %v182 = vlaneseq
    %v183 = vshrl.u32 %v182, 7
    %v184 = vsub.s32 4, %v183
    %v185 = vrot.slane %v144, %v184
    %vm186 = vcmask 1043459
    %v187 = vsel %vm186, %v181, %v173
    %v188 = vsel %vm186, %v185, %v177
    %vm191 = vcmask 1041408
    %v192 = vsel %vm191, %v164, %v187
    %v193 = vsel %vm191, %v165, %v188
    %v194 = vstv %s54
    %v195 = vadd.f32 %v192, %v194
    %v196 = vadd.f32 %v193, %v194
    %v197 = vstv %s55
    %v198 = vmul.f32 %v197, %v195
    %v199 = vmul.f32 %v197, %v196
    %vm200 = vcmask 1043456
    %v201 = vsel %vm200, %v198, -inf
    %v202 = vsel %vm200, %v199, -inf
    %v203 = vmax.f32 %v201, %v202
    %204 = vmax.xlane.f32.xlu0 %v203
    %v205 = vpop.xlane.xlu0 %204
    %v206 = vsub.f32 %v198, %v205
    %v207 = vsub.f32 %v199, %v205
    %v208 = vmul.f32 %v206, 1.442695
    %v209 = vpow.pop %v208
    %v210 = vmul.f32 %v207, 1.442695
    %v211 = vpow.pop %v210
    %v212 = vsel %vm200, %v209, 0.0
    %v213 = vsel %vm200, %v211, 0.0
    %v214 = vadd.f32 %v212, %v213
    %215 = vadd.xlane.f32.xlu0 %v214
    %v216 = vpop.xlane.xlu0 %215
    %v217 = vrcp.pop %v216
    %v218 = vmul.f32 %v209, %v217
    %v219 = vmul.f32 %v211, %v217
    %v222 = vrot.slane %v218, 2
    %v223 = vrot.slane %v219, 2
    %v226 = vsub.f32 %v218, %v222
    %v227 = vsub.f32 %v219, %v223
    %v228 = vmul.f32 %v226, %v226
    %v229 = vmul.f32 %v227, %v227
    %v230 = vsel %vm191, %v228, 0.0
    %v231 = vsel %vm191, %v229, 0.0
    %v232 = vadd.f32 %v230, %v231
    %233 = vadd.xlane.f32.xlu0 %v232
    %v234 = vpop.xlane.xlu0 %233
    %v235 = vrsqrt.pop %v234
    %v236 = vmul.f32 %v234, %v235
    %vm237 = vcmp.eq.f32.partialorder %v234, inf
    %v238 = vsel %vm237, %v234, %v236
    %vm239 = vcmp.eq.f32.partialorder %v234, 0.0
    %v240 = vand.u32 %v234, 2147483648
    %v241 = vsel %vm239, %v240, %v238
    %v242 = vsub.f32 %v241, %v241
    %v243 = vstv %s56
    %v244 = vmul.f32 %v243, %v242
    %v245 = vxor.u32 %v244, 2147483648
    %v246 = vmul.f32 %v245, 1.442695
    %v247 = vpow.pop %v246
    %v248 = vadd.f32 %v247, 1.0
    %v249 = vrcp.pop %v248
    %v250 = vmul.f32 1.0, %v249
    %v252 = vlaneseq
    %v253 = vshrl.u32 %v252, 7
    %v254 = vsub.s32 0, %v253
    %v255 = vrot.slane %v250, %v254
    %v256 = vlaneseq
    %v257 = vshrl.u32 %v256, 7
    %v258 = vsub.s32 1, %v257
    %v259 = vrot.slane %v250, %v258
    %262 = vst [vmem:[#allocation9] sm:$0x1] %v255
    %263 = vst [vmem:[#allocation9 + $0x1] sm:$0x1] %v259
    // Predicated region
    $region26: #{tpu_custom_call.1} parent=1 // pred_check
      _
    $region27: #{tpu_custom_call.1} parent=1 // pred_check_branch
      %265 = sbr.rel (0) target = $region29
    $region28: #{tpu_custom_call.1} parent=1 // pred_region
      %s267 = ssub.s32 32, 32
      %268 = vsyncadd [#allocation4], %s267
      %s269 = sshll.u32 [#allocation9], 4
      %s270 = int_to_ptr.vmem [resolvable:$true] %s269
      %275 = dma.vmem_to_hbm [thread:$0]  %s270, 32, %s3, [#allocation4], 16, 16, 1
    $region29: #{tpu_custom_call.1} parent=1 // pred_fallthru
      _
    // Predicated region
    $region30: #{tpu_custom_call.1} parent=1 // pred_check
      _
    $region31: #{tpu_custom_call.1} parent=1 // pred_check_branch
      %277 = sbr.rel (0) target = $region33
    $region32: #{tpu_custom_call.1} parent=1 // pred_region
      %278 = dma.done [#allocation4], 32
    $region33: #{tpu_custom_call.1} parent=1 // pred_fallthru
      _
    %279 = vsyncpa [#allocation3], 1
    %280 = vsyncpa [#allocation8], 1
    %281 = vsyncpa [#allocation4], 1
    %282 = vsyncpa [#allocation5], 1

</llo_original>
